<compile_context>
chip_gen: v7x
topology: tpu7x:2x2x1
jax: 0.10.0
libtpu: 0.0.40
codegen_flags: <defaults>
</compile_context>

<pallas_src>
import functools

import jax
import jax.numpy as jnp
from jax.experimental import pallas as pl
from jax.experimental.pallas import tpu as pltpu


def _round_up(x: int, m: int) -> int:
    return ((x + m - 1) // m) * m


def _round_down(x: int, m: int) -> int:
    return (x // m) * m


def _cdiv(a: int, b: int) -> int:
    return -(-a // b)


def _vmem_capacity_bytes() -> int:
    """Physical VMEM per TensorCore; conservative (v7x) fallback."""
    try:
        return int(pltpu.get_tpu_info().vmem_capacity_bytes)
    except Exception:
        return 64 * 1024 * 1024


def _make_cw_kernel(true_b: int, tb: int, c: int, margin: float):
    """Kernel producing ONE f32 partial sum of clamped CW margins per tile."""

    def cw_loss_kernel(logits_ref, targets_ref, out_ref):
        # Native-dtype DMA; upcast to f32 only once the tile is in VMEM.
        logits = logits_ref[...].astype(jnp.float32)                # (tb, C)
        targets = targets_ref[...]                                   # (tb, 1) i32

        # Target mask from a lane-axis iota (no float one-hot materialized).
        class_ids = jax.lax.broadcasted_iota(jnp.int32, (tb, c), 1)
        is_target = class_ids == targets                             # (tb, C)

        # self  = logits[target]
        # other = max over classes with the target entry forced to -1000
        #         (same values as (1-onehot)*logits - onehot*1000).
        self_loss = jnp.sum(jnp.where(is_target, logits, 0.0),
                            axis=1, keepdims=True)                   # (tb, 1)
        other_loss = jnp.max(jnp.where(is_target, jnp.float32(-1000.0), logits),
                             axis=1, keepdims=True)                  # (tb, 1)

        per_sample = jnp.maximum(self_loss - other_loss + jnp.float32(margin),
                                 0.0)                                # (tb, 1)

        # Rows past the true batch (ragged boundary tile) contribute zero.
        row_ids = (pl.program_id(0) * tb
                   + jax.lax.broadcasted_iota(jnp.int32, (tb, 1), 0))
        per_sample = jnp.where(row_ids < true_b, per_sample, 0.0)

        # One scalar per tile: no lane-sparse per-sample writeback, and every
        # grid step still writes a distinct block (parallel stays legal).
        out_ref[...] = jnp.sum(per_sample, axis=0, keepdims=True)[None]

    return cw_loss_kernel


@functools.partial(jax.jit, static_argnames=("num_classes", "margin", "reduce"))
def cw_loss(logits, targets, num_classes, margin=2.0, reduce=True):
    """Pallas TPU implementation of CWLoss.forward.

    logits:  (B, num_classes) float array (any float dtype; upcast in-kernel)
    targets: (B,) int array of class indices
    returns: scalar float32 loss
    """
    B, C = logits.shape
    assert C == num_classes
    itemsize = jnp.dtype(logits.dtype).itemsize

    # ---- Tile sizing (bytes, not rows) --------------------------------------
    C_pad = _round_up(C, 128)                          # VMEM pads the lane dim
    sublane = {1: 32, 2: 16, 4: 8}.get(itemsize, 8)    # dtype sublane packing

    # Per-row VMEM footprint: double-buffered logits tile (lane padded, native
    # dtype) + double-buffered (tb,1)->(tb,128) i32 targets tile + headroom for
    # the in-kernel f32 upcast / select temporaries.
    per_row_vmem = 2 * (C_pad * itemsize + 128 * 4) + 4 * C_pad * 4

    vmem_cap = _vmem_capacity_bytes()
    vmem_budget = min(vmem_cap // 2, 64 * 1024 * 1024)

    # Prefer 128-row alignment (valid for f32/bf16/int8 packing alike and
    # keeps layouts dense); only huge C drops to the dtype sublane multiple.
    row_align = 128 if per_row_vmem * 128 <= vmem_budget else sublane

    tb_vmem = max(row_align, _round_down(vmem_budget // per_row_vmem, row_align))
    # ~4 MiB of *true* logits bytes per tile keeps the ~0.35us per-step
    # overhead negligible against the DMA (mem-bound streaming kernel).
    tb_dma = max(row_align,
                 _round_down((4 * 1024 * 1024) // max(C * itemsize, 1), row_align))
    tb = min(tb_vmem, tb_dma, _round_up(B, row_align))
    if B > row_align:
        # v7x megacore: guarantee >= 2 tiles so the "parallel" batch axis can
        # be sharded across both TensorCores (neutral on v5e/v6e).
        tb = min(tb, _round_up(_cdiv(B, 2), row_align))

    num_tiles = _cdiv(B, tb)

    # TODO(synk): for num_classes < 128, pack 128//C samples per lane row
    # (wrapper reshape + segmented in-kernel reductions) to avoid lane-sparse
    # vregs; deferred to keep the kernel simple and robust.
    # TODO(synk): for vocabulary-sized num_classes whose sublane tile exceeds
    # VMEM, chunk the class axis with running max/sum accumulators.

    targets2d = targets.astype(jnp.int32).reshape(B, 1)

    kernel = _make_cw_kernel(B, tb, C, float(margin))

    # Scoped-VMEM limit derived from the actual padded tile footprint.
    vmem_limit = int(min(vmem_cap,
                         max(16 * 1024 * 1024, per_row_vmem * tb + (4 << 20))))

    partial_sums = pl.pallas_call(
        kernel,
        out_shape=jax.ShapeDtypeStruct((num_tiles, 1, 1), jnp.float32),
        grid=(num_tiles,),
        in_specs=[
            pl.BlockSpec((tb, C), lambda i: (i, 0)),   # logits tile (native dtype)
            pl.BlockSpec((tb, 1), lambda i: (i, 0)),   # targets tile (i32)
        ],
        out_specs=pl.BlockSpec((1, 1, 1), lambda i: (i, 0, 0)),
        compiler_params=pltpu.CompilerParams(
            dimension_semantics=("parallel",),
            vmem_limit_bytes=vmem_limit,
        ),
    )(logits, targets2d)

    # Tiny final reduction in JAX (num_tiles scalars).
    loss = -jnp.sum(partial_sums)
    if reduce:
        loss = loss / jnp.float32(B)
    return loss


def cw_loss_ref(logits, targets, num_classes, margin=2.0, reduce=True):
    """Pure-JAX reference mirroring the PyTorch module."""
    onehot = jax.nn.one_hot(targets, num_classes, dtype=jnp.float32)
    logits = logits.astype(jnp.float32)
    self_loss = jnp.sum(onehot * logits, axis=1)
    other_loss = jnp.max((1.0 - onehot) * logits - onehot * 1000.0, axis=1)
    loss = -jnp.sum(jnp.maximum(self_loss - other_loss + margin, 0.0))
    if reduce:
        loss = loss / logits.shape[0]
    return loss


if __name__ == "__main__":
    num_classes = 16
    margin = 2.0
    key = jax.random.PRNGKey(0)
    k1, k2 = jax.random.split(key)

    # Small deterministic case.
    batch = 8
    logits = jax.random.normal(k1, (batch, num_classes), jnp.float32) * 3.0
    targets = jax.random.randint(k2, (batch,), 0, num_classes, dtype=jnp.int32)
    loss = jax.block_until_ready(
        cw_loss(logits, targets, num_classes, margin=margin, reduce=True))
    ref = cw_loss_ref(logits, targets, num_classes, margin=margin, reduce=True)
    assert jnp.allclose(loss, ref, atol=1e-5, rtol=1e-5), (loss, ref)

    # Ragged batch (not a multiple of the tile) exercises the boundary mask.
    b2 = 13
    logits2 = jax.random.normal(k1, (b2, num_classes), jnp.float32) * 3.0
    targets2 = jax.random.randint(k2, (b2,), 0, num_classes, dtype=jnp.int32)
    loss2 = jax.block_until_ready(
        cw_loss(logits2, targets2, num_classes, margin=margin, reduce=False))
    ref2 = cw_loss_ref(logits2, targets2, num_classes, margin=margin, reduce=False)
    assert jnp.allclose(loss2, ref2, atol=1e-4, rtol=1e-5), (loss2, ref2)

    # Multi-tile case (B > 128) exercises the parallel grid + per-tile partials.
    b3, c3 = 1000, 40
    logits3 = jax.random.normal(k1, (b3, c3), jnp.float32) * 3.0
    targets3 = jax.random.randint(k2, (b3,), 0, c3, dtype=jnp.int32)
    loss3 = jax.block_until_ready(
        cw_loss(logits3, targets3, c3, margin=margin, reduce=True))
    ref3 = cw_loss_ref(logits3, targets3, c3, margin=margin, reduce=True)
    assert jnp.allclose(loss3, ref3, atol=1e-4, rtol=1e-5), (loss3, ref3)

    # bf16 logits take the native-dtype DMA path (f32 upcast happens in VMEM).
    logits4 = (jax.random.normal(k1, (64, num_classes), jnp.float32) * 3.0
               ).astype(jnp.bfloat16)
    targets4 = jax.random.randint(k2, (64,), 0, num_classes, dtype=jnp.int32)
    loss4 = jax.block_until_ready(
        cw_loss(logits4, targets4, num_classes, margin=margin, reduce=True))
    ref4 = cw_loss_ref(logits4, targets4, num_classes, margin=margin, reduce=True)
    assert jnp.allclose(loss4, ref4, atol=1e-3, rtol=1e-3), (loss4, ref4)

    print("KERNEL_OK")
</pallas_src>

<mosaic_0001>
module attributes {stable_mosaic.version = 11 : i64} {
  func.func @cw_loss_kernel(%arg0: i32, %arg1: memref<128x16xf32, #tpu.memory_space<vmem>>, %arg2: memref<128x1xi32, #tpu.memory_space<vmem>>, %arg3: memref<1x1x1xf32, #tpu.memory_space<vmem>>) attributes {dimension_semantics = [#tpu.dimension_semantics<parallel>], iteration_bounds = array<i64: 1>, scalar_prefetch = 0 : i64, scratch_operands = 0 : i64, tpu.core_type = #tpu.core_type<tc>, window_params = [{transform_indices = @transform_0, window_bounds = array<i64: 128, 16>}, {transform_indices = @transform_1, window_bounds = array<i64: 128, 1>}, {transform_indices = @transform_2, window_bounds = array<i64: 1, 1, 1>}]} {
    %c0 = arith.constant 0 : index
    %c0_0 = arith.constant 0 : index
    %0 = vector.load %arg1[%c0, %c0_0] : memref<128x16xf32, #tpu.memory_space<vmem>>, vector<128x16xf32>
    %c0_1 = arith.constant 0 : index
    %c0_2 = arith.constant 0 : index
    %1 = vector.load %arg2[%c0_1, %c0_2] : memref<128x1xi32, #tpu.memory_space<vmem>>, vector<128x1xi32>
    %2 = tpu.iota {dimensions = array<i32: 1>} : vector<128x16xi32>
    %3 = vector.broadcast %1 : vector<128x1xi32> to vector<128x16xi32>
    %4 = arith.cmpi eq, %2, %3 : vector<128x16xi32>
    %cst = arith.constant 0.000000e+00 : f32
    %5 = vector.broadcast %cst : f32 to vector<128x16xf32>
    %6 = arith.select %4, %0, %5 : vector<128x16xi1>, vector<128x16xf32>
    %cst_3 = arith.constant dense<0.000000e+00> : vector<128xf32>
    %7 = vector.multi_reduction <add>, %6, %cst_3 [1] : vector<128x16xf32> to vector<128xf32>
    %8 = vector.shape_cast %7 : vector<128xf32> to vector<128x1xf32>
    %cst_4 = arith.constant -1.000000e+03 : f32
    %9 = vector.broadcast %cst_4 : f32 to vector<128x16xf32>
    %10 = arith.select %4, %9, %0 : vector<128x16xi1>, vector<128x16xf32>
    %cst_5 = arith.constant dense<0xFF800000> : vector<128xf32>
    %11 = vector.multi_reduction <maximumf>, %10, %cst_5 [1] : vector<128x16xf32> to vector<128xf32>
    %12 = vector.shape_cast %11 : vector<128xf32> to vector<128x1xf32>
    %13 = arith.subf %8, %12 : vector<128x1xf32>
    %cst_6 = arith.constant 2.000000e+00 : f32
    %14 = vector.broadcast %cst_6 : f32 to vector<128x1xf32>
    %15 = arith.addf %13, %14 : vector<128x1xf32>
    %cst_7 = arith.constant 0.000000e+00 : f32
    %16 = vector.broadcast %cst_7 : f32 to vector<128x1xf32>
    %17 = arith.maximumf %15, %16 : vector<128x1xf32>
    %c128_i32 = arith.constant 128 : i32
    %18 = arith.muli %arg0, %c128_i32 : i32
    %19 = tpu.iota {dimensions = array<i32: 0>} : vector<128x1xi32>
    %20 = vector.broadcast %18 : i32 to vector<128x1xi32>
    %21 = arith.addi %20, %19 : vector<128x1xi32>
    %c8_i32 = arith.constant 8 : i32
    %22 = vector.broadcast %c8_i32 : i32 to vector<128x1xi32>
    %23 = arith.cmpi slt, %21, %22 : vector<128x1xi32>
    %cst_8 = arith.constant 0.000000e+00 : f32
    %24 = vector.broadcast %cst_8 : f32 to vector<128x1xf32>
    %25 = arith.select %23, %17, %24 : vector<128x1xi1>, vector<128x1xf32>
    %cst_9 = arith.constant dense<0.000000e+00> : vector<1xf32>
    %26 = vector.multi_reduction <add>, %25, %cst_9 [0] : vector<128x1xf32> to vector<1xf32>
    %27 = vector.shape_cast %26 : vector<1xf32> to vector<1x1xf32>
    %28 = vector.shape_cast %27 : vector<1x1xf32> to vector<1x1x1xf32>
    %c0_10 = arith.constant 0 : index
    %c0_11 = arith.constant 0 : index
    %c0_12 = arith.constant 0 : index
    %29 = vector.load %arg3[%c0_10, %c0_11, %c0_12] : memref<1x1x1xf32, #tpu.memory_space<vmem>>, vector<1x1x1xf32>
    tpu.vector_store %arg3[%c0_10, %c0_11, %c0_12], %28 {strides = array<i32>} : memref<1x1x1xf32, #tpu.memory_space<vmem>>, vector<1x1x1xf32>,
    return
  }
  func.func @transform_0(%arg0: i32) -> (i32, i32) {
    %c0_i32 = arith.constant 0 : i32
    %c0_i32_0 = arith.constant 0 : i32
    return %arg0, %c0_i32 : i32, i32
  }
  func.func @transform_1(%arg0: i32) -> (i32, i32) {
    %c0_i32 = arith.constant 0 : i32
    %c0_i32_0 = arith.constant 0 : i32
    return %arg0, %c0_i32 : i32, i32
  }
  func.func @transform_2(%arg0: i32) -> (i32, i32, i32) {
    %c0_i32 = arith.constant 0 : i32
    %c0_i32_0 = arith.constant 0 : i32
    %c0_i32_1 = arith.constant 0 : i32
    return %arg0, %c0_i32, %c0_i32_0 : i32, i32, i32
  }
}

</mosaic_0001>

<llo_original>
// kernel: cw_loss.1
$region0: #{cw_loss.1}
  #allocation0 [shape = 'u32[]', space=smem, size = 0x4, offset = 0x4, fixed_abs, tag = 'smem constant byte address 0x4 - core index']
  #allocation1 [shape = 'u32[144,128]{1,0:T(1,128)}', space=vmem, size = 0x12000, scoped, tag = 'internal scratch']
  %s0 = inlined_call_operand.vmem [shape: f32[8,16], index: 0, kind: input, shape index: {}]
  %s1 = inlined_call_operand.vmem [shape: s32[8,1], index: 1, kind: input, shape index: {}]
  %s2 = inlined_call_operand.hbm [shape: f32[1,1,1], index: 2, kind: output, shape index: {}]
  %s3 = sld [smem:[#allocation0]]
  $region18: #{cw_loss.1} parent=0
    _
  %s5 = ssub.s32 1, %s3
  %s6 = scalar_select 0, %s5, %s3
  $region1: #{cw_loss.1} parent=0
    #allocation2 [shape = 'u8[512]{0}', space=vmem, size = 0x400, scoped, tag = 'output window, operand 0, single buffered']
    #allocation3 [shape = 's32[1]{0}', space=sflag, size = 0x4, scoped, tag = 'scoped memory for cw_loss.1']
    %7 = vsyncpa [#allocation3], 0
    // Predicated region
    $region2: #{cw_loss.1} parent=1 // pred_check
      _
    $region3: #{cw_loss.1} parent=1 // pred_check_branch
      %9 = sbr.rel (0) target = $region5
    $region4: #{cw_loss.1} parent=1 // pred_region
      _
    $region5: #{cw_loss.1} parent=1 // pred_fallthru
      _
    // Predicated region
    $region6: #{cw_loss.1} parent=1 // pred_check
      _
    $region7: #{cw_loss.1} parent=1 // pred_check_branch
      %11 = sbr.rel (0) target = $region9
    $region8: #{cw_loss.1} parent=1 // pred_region
      _
    $region9: #{cw_loss.1} parent=1 // pred_fallthru
      _
    %v12 = vld [vmem:[%s0] sm:$0xff]
    %v13 = vld [vmem:[%s0 + $0x8] sm:$0xff]
    %v14 = vld [vmem:[%s0 + $0x10] sm:$0xff]
    %v15 = vld [vmem:[%s0 + $0x18] sm:$0xff]
    %v16 = vld [vmem:[%s0 + $0x20] sm:$0xff]
    %v17 = vld [vmem:[%s0 + $0x28] sm:$0xff]
    %v18 = vld [vmem:[%s0 + $0x30] sm:$0xff]
    %v19 = vld [vmem:[%s0 + $0x38] sm:$0xff]
    %v20 = vld [vmem:[%s0 + $0x40] sm:$0xff]
    %v21 = vld [vmem:[%s0 + $0x48] sm:$0xff]
    %v22 = vld [vmem:[%s0 + $0x50] sm:$0xff]
    %v23 = vld [vmem:[%s0 + $0x58] sm:$0xff]
    %v24 = vld [vmem:[%s0 + $0x60] sm:$0xff]
    %v25 = vld [vmem:[%s0 + $0x68] sm:$0xff]
    %v26 = vld [vmem:[%s0 + $0x70] sm:$0xff]
    %v27 = vld [vmem:[%s0 + $0x78] sm:$0xff]
    %v28 = vld [vmem:[%s1] sm:$0xff]
    %v29 = vld [vmem:[%s1 + $0x8] sm:$0xff]
    %v30 = vld [vmem:[%s1 + $0x10] sm:$0xff]
    %v31 = vld [vmem:[%s1 + $0x18] sm:$0xff]
    %v32 = vld [vmem:[%s1 + $0x20] sm:$0xff]
    %v33 = vld [vmem:[%s1 + $0x28] sm:$0xff]
    %v34 = vld [vmem:[%s1 + $0x30] sm:$0xff]
    %v35 = vld [vmem:[%s1 + $0x38] sm:$0xff]
    %v36 = vld [vmem:[%s1 + $0x40] sm:$0xff]
    %v37 = vld [vmem:[%s1 + $0x48] sm:$0xff]
    %v38 = vld [vmem:[%s1 + $0x50] sm:$0xff]
    %v39 = vld [vmem:[%s1 + $0x58] sm:$0xff]
    %v40 = vld [vmem:[%s1 + $0x60] sm:$0xff]
    %v41 = vld [vmem:[%s1 + $0x68] sm:$0xff]
    %v42 = vld [vmem:[%s1 + $0x70] sm:$0xff]
    %v43 = vld [vmem:[%s1 + $0x78] sm:$0xff]
    %v44 = vlaneseq
    %v45 = vand.u32 %v44, 127
    %46 = vset.pattern.permute.xlu0 0
    %47 = vperm.xlu0 %46, %v28
    %v48 = vpop.permute.xlu0 %47
    %49 = vset.pattern.permute.xlu0 0
    %50 = vperm.xlu0 %49, %v29
    %v51 = vpop.permute.xlu0 %50
    %52 = vset.pattern.permute.xlu0 0
    %53 = vperm.xlu0 %52, %v30
    %v54 = vpop.permute.xlu0 %53
    %55 = vset.pattern.permute.xlu0 0
    %56 = vperm.xlu0 %55, %v31
    %v57 = vpop.permute.xlu0 %56
    %58 = vset.pattern.permute.xlu0 0
    %59 = vperm.xlu0 %58, %v32
    %v60 = vpop.permute.xlu0 %59
    %61 = vset.pattern.permute.xlu0 0
    %62 = vperm.xlu0 %61, %v33
    %v63 = vpop.permute.xlu0 %62
    %64 = vset.pattern.permute.xlu0 0
    %65 = vperm.xlu0 %64, %v34
    %v66 = vpop.permute.xlu0 %65
    %67 = vset.pattern.permute.xlu0 0
    %68 = vperm.xlu0 %67, %v35
    %v69 = vpop.permute.xlu0 %68
    %70 = vset.pattern.permute.xlu0 0
    %71 = vperm.xlu0 %70, %v36
    %v72 = vpop.permute.xlu0 %71
    %73 = vset.pattern.permute.xlu0 0
    %74 = vperm.xlu0 %73, %v37
    %v75 = vpop.permute.xlu0 %74
    %76 = vset.pattern.permute.xlu0 0
    %77 = vperm.xlu0 %76, %v38
    %v78 = vpop.permute.xlu0 %77
    %79 = vset.pattern.permute.xlu0 0
    %80 = vperm.xlu0 %79, %v39
    %v81 = vpop.permute.xlu0 %80
    %82 = vset.pattern.permute.xlu0 0
    %83 = vperm.xlu0 %82, %v40
    %v84 = vpop.permute.xlu0 %83
    %85 = vset.pattern.permute.xlu0 0
    %86 = vperm.xlu0 %85, %v41
    %v87 = vpop.permute.xlu0 %86
    %88 = vset.pattern.permute.xlu0 0
    %89 = vperm.xlu0 %88, %v42
    %v90 = vpop.permute.xlu0 %89
    %91 = vset.pattern.permute.xlu0 0
    %92 = vperm.xlu0 %91, %v43
    %v93 = vpop.permute.xlu0 %92
    %vm94 = vcmp.eq.s32.totalorder %v45, %v48
    %vm95 = vcmp.eq.s32.totalorder %v45, %v51
    %vm96 = vcmp.eq.s32.totalorder %v45, %v54
    %vm97 = vcmp.eq.s32.totalorder %v45, %v57
    %vm98 = vcmp.eq.s32.totalorder %v45, %v60
    %vm99 = vcmp.eq.s32.totalorder %v45, %v63
    %vm100 = vcmp.eq.s32.totalorder %v45, %v66
    %vm101 = vcmp.eq.s32.totalorder %v45, %v69
    %vm102 = vcmp.eq.s32.totalorder %v45, %v72
    %vm103 = vcmp.eq.s32.totalorder %v45, %v75
    %vm104 = vcmp.eq.s32.totalorder %v45, %v78
    %vm105 = vcmp.eq.s32.totalorder %v45, %v81
    %vm106 = vcmp.eq.s32.totalorder %v45, %v84
    %vm107 = vcmp.eq.s32.totalorder %v45, %v87
    %vm108 = vcmp.eq.s32.totalorder %v45, %v90
    %vm109 = vcmp.eq.s32.totalorder %v45, %v93
    %v110 = vsel %vm94, %v12, 0.0
    %v111 = vsel %vm95, %v13, 0.0
    %v112 = vsel %vm96, %v14, 0.0
    %v113 = vsel %vm97, %v15, 0.0
    %v114 = vsel %vm98, %v16, 0.0
    %v115 = vsel %vm99, %v17, 0.0
    %v116 = vsel %vm100, %v18, 0.0
    %v117 = vsel %vm101, %v19, 0.0
    %v118 = vsel %vm102, %v20, 0.0
    %v119 = vsel %vm103, %v21, 0.0
    %v120 = vsel %vm104, %v22, 0.0
    %v121 = vsel %vm105, %v23, 0.0
    %v122 = vsel %vm106, %v24, 0.0
    %v123 = vsel %vm107, %v25, 0.0
    %v124 = vsel %vm108, %v26, 0.0
    %v125 = vsel %vm109, %v27, 0.0
    %vm126 = vcmask 130048
    %v127 = vsel %vm126, %v110, 0.0
    %128 = vadd.xlane.f32.xlu0 %v127
    %v129 = vpop.xlane.xlu0 %128
    %v130 = vsel %vm126, %v111, 0.0
    %131 = vadd.xlane.f32.xlu0 %v130
    %v132 = vpop.xlane.xlu0 %131
    %v133 = vsel %vm126, %v112, 0.0
    %134 = vadd.xlane.f32.xlu0 %v133
    %v135 = vpop.xlane.xlu0 %134
    %v136 = vsel %vm126, %v113, 0.0
    %137 = vadd.xlane.f32.xlu0 %v136
    %v138 = vpop.xlane.xlu0 %137
    %v139 = vsel %vm126, %v114, 0.0
    %140 = vadd.xlane.f32.xlu0 %v139
    %v141 = vpop.xlane.xlu0 %140
    %v142 = vsel %vm126, %v115, 0.0
    %143 = vadd.xlane.f32.xlu0 %v142
    %v144 = vpop.xlane.xlu0 %143
    %v145 = vsel %vm126, %v116, 0.0
    %146 = vadd.xlane.f32.xlu0 %v145
    %v147 = vpop.xlane.xlu0 %146
    %v148 = vsel %vm126, %v117, 0.0
    %149 = vadd.xlane.f32.xlu0 %v148
    %v150 = vpop.xlane.xlu0 %149
    %v151 = vsel %vm126, %v118, 0.0
    %152 = vadd.xlane.f32.xlu0 %v151
    %v153 = vpop.xlane.xlu0 %152
    %v154 = vsel %vm126, %v119, 0.0
    %155 = vadd.xlane.f32.xlu0 %v154
    %v156 = vpop.xlane.xlu0 %155
    %v157 = vsel %vm126, %v120, 0.0
    %158 = vadd.xlane.f32.xlu0 %v157
    %v159 = vpop.xlane.xlu0 %158
    %v160 = vsel %vm126, %v121, 0.0
    %161 = vadd.xlane.f32.xlu0 %v160
    %v162 = vpop.xlane.xlu0 %161
    %v163 = vsel %vm126, %v122, 0.0
    %164 = vadd.xlane.f32.xlu0 %v163
    %v165 = vpop.xlane.xlu0 %164
    %v166 = vsel %vm126, %v123, 0.0
    %167 = vadd.xlane.f32.xlu0 %v166
    %v168 = vpop.xlane.xlu0 %167
    %v169 = vsel %vm126, %v124, 0.0
    %170 = vadd.xlane.f32.xlu0 %v169
    %v171 = vpop.xlane.xlu0 %170
    %v172 = vsel %vm126, %v125, 0.0
    %173 = vadd.xlane.f32.xlu0 %v172
    %v174 = vpop.xlane.xlu0 %173
    %v175 = vsel %vm94, -1000.0, %v12
    %v176 = vsel %vm95, -1000.0, %v13
    %v177 = vsel %vm96, -1000.0, %v14
    %v178 = vsel %vm97, -1000.0, %v15
    %v179 = vsel %vm98, -1000.0, %v16
    %v180 = vsel %vm99, -1000.0, %v17
    %v181 = vsel %vm100, -1000.0, %v18
    %v182 = vsel %vm101, -1000.0, %v19
    %v183 = vsel %vm102, -1000.0, %v20
    %v184 = vsel %vm103, -1000.0, %v21
    %v185 = vsel %vm104, -1000.0, %v22
    %v186 = vsel %vm105, -1000.0, %v23
    %v187 = vsel %vm106, -1000.0, %v24
    %v188 = vsel %vm107, -1000.0, %v25
    %v189 = vsel %vm108, -1000.0, %v26
    %v190 = vsel %vm109, -1000.0, %v27
    %v191 = vsel %vm126, %v175, -inf
    %192 = vmax.xlane.f32.xlu0 %v191
    %v193 = vpop.xlane.xlu0 %192
    %v194 = vsel %vm126, %v176, -inf
    %195 = vmax.xlane.f32.xlu0 %v194
    %v196 = vpop.xlane.xlu0 %195
    %v197 = vsel %vm126, %v177, -inf
    %198 = vmax.xlane.f32.xlu0 %v197
    %v199 = vpop.xlane.xlu0 %198
    %v200 = vsel %vm126, %v178, -inf
    %201 = vmax.xlane.f32.xlu0 %v200
    %v202 = vpop.xlane.xlu0 %201
    %v203 = vsel %vm126, %v179, -inf
    %204 = vmax.xlane.f32.xlu0 %v203
    %v205 = vpop.xlane.xlu0 %204
    %v206 = vsel %vm126, %v180, -inf
    %207 = vmax.xlane.f32.xlu0 %v206
    %v208 = vpop.xlane.xlu0 %207
    %v209 = vsel %vm126, %v181, -inf
    %210 = vmax.xlane.f32.xlu0 %v209
    %v211 = vpop.xlane.xlu0 %210
    %v212 = vsel %vm126, %v182, -inf
    %213 = vmax.xlane.f32.xlu0 %v212
    %v214 = vpop.xlane.xlu0 %213
    %v215 = vsel %vm126, %v183, -inf
    %216 = vmax.xlane.f32.xlu0 %v215
    %v217 = vpop.xlane.xlu0 %216
    %v218 = vsel %vm126, %v184, -inf
    %219 = vmax.xlane.f32.xlu0 %v218
    %v220 = vpop.xlane.xlu0 %219
    %v221 = vsel %vm126, %v185, -inf
    %222 = vmax.xlane.f32.xlu0 %v221
    %v223 = vpop.xlane.xlu0 %222
    %v224 = vsel %vm126, %v186, -inf
    %225 = vmax.xlane.f32.xlu0 %v224
    %v226 = vpop.xlane.xlu0 %225
    %v227 = vsel %vm126, %v187, -inf
    %228 = vmax.xlane.f32.xlu0 %v227
    %v229 = vpop.xlane.xlu0 %228
    %v230 = vsel %vm126, %v188, -inf
    %231 = vmax.xlane.f32.xlu0 %v230
    %v232 = vpop.xlane.xlu0 %231
    %v233 = vsel %vm126, %v189, -inf
    %234 = vmax.xlane.f32.xlu0 %v233
    %v235 = vpop.xlane.xlu0 %234
    %v236 = vsel %vm126, %v190, -inf
    %237 = vmax.xlane.f32.xlu0 %v236
    %v238 = vpop.xlane.xlu0 %237
    %v239 = vsub.f32 %v129, %v193
    %v240 = vsub.f32 %v132, %v196
    %v241 = vsub.f32 %v135, %v199
    %v242 = vsub.f32 %v138, %v202
    %v243 = vsub.f32 %v141, %v205
    %v244 = vsub.f32 %v144, %v208
    %v245 = vsub.f32 %v147, %v211
    %v246 = vsub.f32 %v150, %v214
    %v247 = vsub.f32 %v153, %v217
    %v248 = vsub.f32 %v156, %v220
    %v249 = vsub.f32 %v159, %v223
    %v250 = vsub.f32 %v162, %v226
    %v251 = vsub.f32 %v165, %v229
    %v252 = vsub.f32 %v168, %v232
    %v253 = vsub.f32 %v171, %v235
    %v254 = vsub.f32 %v174, %v238
    %v255 = vadd.f32 %v239, 2.0
    %v256 = vadd.f32 %v240, 2.0
    %v257 = vadd.f32 %v241, 2.0
    %v258 = vadd.f32 %v242, 2.0
    %v259 = vadd.f32 %v243, 2.0
    %v260 = vadd.f32 %v244, 2.0
    %v261 = vadd.f32 %v245, 2.0
    %v262 = vadd.f32 %v246, 2.0
    %v263 = vadd.f32 %v247, 2.0
    %v264 = vadd.f32 %v248, 2.0
    %v265 = vadd.f32 %v249, 2.0
    %v266 = vadd.f32 %v250, 2.0
    %v267 = vadd.f32 %v251, 2.0
    %v268 = vadd.f32 %v252, 2.0
    %v269 = vadd.f32 %v253, 2.0
    %v270 = vadd.f32 %v254, 2.0
    %v271 = vmax.f32 %v255, 0.0
    %v272 = vmax.f32 %v256, 0.0
    %v273 = vmax.f32 %v257, 0.0
    %v274 = vmax.f32 %v258, 0.0
    %v275 = vmax.f32 %v259, 0.0
    %v276 = vmax.f32 %v260, 0.0
    %v277 = vmax.f32 %v261, 0.0
    %v278 = vmax.f32 %v262, 0.0
    %v279 = vmax.f32 %v263, 0.0
    %v280 = vmax.f32 %v264, 0.0
    %v281 = vmax.f32 %v265, 0.0
    %v282 = vmax.f32 %v266, 0.0
    %v283 = vmax.f32 %v267, 0.0
    %v284 = vmax.f32 %v268, 0.0
    %v285 = vmax.f32 %v269, 0.0
    %v286 = vmax.f32 %v270, 0.0
    %s287 = smul.u32 0, 128
    %v288 = vlaneseq
    %v289 = vshrl.u32 %v288, 7
    %v290 = vadd.s32 %v289, 8
    %v291 = vadd.s32 %v289, 16
    %v292 = vadd.s32 %v289, 24
    %v293 = vadd.s32 %v289, 32
    %v294 = vadd.s32 %v289, 40
    %v295 = vadd.s32 %v289, 48
    %v296 = vadd.s32 %v289, 56
    %v297 = vadd.s32 %v289, 64
    %v298 = vadd.s32 %v289, 72
    %v299 = vadd.s32 %v289, 80
    %v300 = vadd.s32 %v289, 88
    %v301 = vadd.s32 %v289, 96
    %v302 = vadd.s32 %v289, 104
    %v303 = vadd.s32 %v289, 112
    %v304 = vadd.s32 %v289, 120
    %v305 = vstv %s287
    %v306 = vadd.s32 %v305, %v289
    %v307 = vadd.s32 %v305, %v290
    %v308 = vadd.s32 %v305, %v291
    %v309 = vadd.s32 %v305, %v292
    %v310 = vadd.s32 %v305, %v293
    %v311 = vadd.s32 %v305, %v294
    %v312 = vadd.s32 %v305, %v295
    %v313 = vadd.s32 %v305, %v296
    %v314 = vadd.s32 %v305, %v297
    %v315 = vadd.s32 %v305, %v298
    %v316 = vadd.s32 %v305, %v299
    %v317 = vadd.s32 %v305, %v300
    %v318 = vadd.s32 %v305, %v301
    %v319 = vadd.s32 %v305, %v302
    %v320 = vadd.s32 %v305, %v303
    %v321 = vadd.s32 %v305, %v304
    %vm322 = vcmp.lt.s32.totalorder %v306, 8
    %vm323 = vcmp.lt.s32.totalorder %v307, 8
    %vm324 = vcmp.lt.s32.totalorder %v308, 8
    %vm325 = vcmp.lt.s32.totalorder %v309, 8
    %vm326 = vcmp.lt.s32.totalorder %v310, 8
    %vm327 = vcmp.lt.s32.totalorder %v311, 8
    %vm328 = vcmp.lt.s32.totalorder %v312, 8
    %vm329 = vcmp.lt.s32.totalorder %v313, 8
    %vm330 = vcmp.lt.s32.totalorder %v314, 8
    %vm331 = vcmp.lt.s32.totalorder %v315, 8
    %vm332 = vcmp.lt.s32.totalorder %v316, 8
    %vm333 = vcmp.lt.s32.totalorder %v317, 8
    %vm334 = vcmp.lt.s32.totalorder %v318, 8
    %vm335 = vcmp.lt.s32.totalorder %v319, 8
    %vm336 = vcmp.lt.s32.totalorder %v320, 8
    %vm337 = vcmp.lt.s32.totalorder %v321, 8
    %v338 = vsel %vm322, %v271, 0.0
    %v339 = vsel %vm323, %v272, 0.0
    %v340 = vsel %vm324, %v273, 0.0
    %v341 = vsel %vm325, %v274, 0.0
    %v342 = vsel %vm326, %v275, 0.0
    %v343 = vsel %vm327, %v276, 0.0
    %v344 = vsel %vm328, %v277, 0.0
    %v345 = vsel %vm329, %v278, 0.0
    %v346 = vsel %vm330, %v279, 0.0
    %v347 = vsel %vm331, %v280, 0.0
    %v348 = vsel %vm332, %v281, 0.0
    %v349 = vsel %vm333, %v282, 0.0
    %v350 = vsel %vm334, %v283, 0.0
    %v351 = vsel %vm335, %v284, 0.0
    %v352 = vsel %vm336, %v285, 0.0
    %v353 = vsel %vm337, %v286, 0.0
    %v354 = vadd.f32 %v338, %v339
    %v355 = vadd.f32 %v354, %v340
    %v356 = vadd.f32 %v355, %v341
    %v357 = vadd.f32 %v356, %v342
    %v358 = vadd.f32 %v357, %v343
    %v359 = vadd.f32 %v358, %v344
    %v360 = vadd.f32 %v359, %v345
    %v361 = vadd.f32 %v360, %v346
    %v362 = vadd.f32 %v361, %v347
    %v363 = vadd.f32 %v362, %v348
    %v364 = vadd.f32 %v363, %v349
    %v365 = vadd.f32 %v364, %v350
    %v366 = vadd.f32 %v365, %v351
    %v367 = vadd.f32 %v366, %v352
    %v368 = vadd.f32 %v367, %v353
    %v369 = vrot.slane %v368, 4
    %v370 = vadd.f32 %v368, %v369
    %v371 = vrot.slane %v370, 2
    %v372 = vadd.f32 %v370, %v371
    %v373 = vrot.slane %v372, 1
    %v374 = vadd.f32 %v372, %v373
    %vm375 = vcmask 0
    %376 = vst.msk [vmem:[#allocation2] sm:$0x1] %vm375, %v374
    // Predicated region
    $region10: #{cw_loss.1} parent=1 // pred_check
      _
    $region11: #{cw_loss.1} parent=1 // pred_check_branch
      %378 = sbr.rel (0) target = $region13
    $region12: #{cw_loss.1} parent=1 // pred_region
      %s380 = ssub.s32 16, 16
      %381 = vsyncadd [#allocation3], %s380
      %s383 = sshll.u32 [#allocation2], 4
      %s384 = int_to_ptr.vmem [resolvable:$true] %s383
      %386 = dma.vmem_to_hbm [thread:$0]  %s384, 16, %s2, [#allocation3]
    $region13: #{cw_loss.1} parent=1 // pred_fallthru
      _
    // Predicated region
    $region14: #{cw_loss.1} parent=1 // pred_check
      _
    $region15: #{cw_loss.1} parent=1 // pred_check_branch
      %388 = sbr.rel (0) target = $region17
    $region16: #{cw_loss.1} parent=1 // pred_region
      %389 = dma.done [#allocation3], 16
    $region17: #{cw_loss.1} parent=1 // pred_fallthru
      _
    %390 = vsyncpa [#allocation3], 1

</llo_original>
